<compile_context>
chip_gen: v7x
topology: tpu7x:2x2x1
jax: 0.10.0
libtpu: 0.0.40
codegen_flags: <defaults>
</compile_context>

<pallas_src>
import jax
import jax.numpy as jnp
from jax.experimental import pallas as pl
from jax.experimental.pallas import tpu as pltpu


def critic_kernel(x_ref, w1_ref, b1_ref, w2_ref, b2_ref, w3_ref, b3_ref, o_ref):
    # fc1: single bf16 MXU matmul over the pre-concatenated (state|action) tile.
    h1 = jnp.dot(x_ref[...], w1_ref[...], preferred_element_type=jnp.float32)
    h1 = jnp.maximum(h1 + b1_ref[...], 0.0)          # f32 epilogue (v5e-safe)

    # fc2: bf16 MXU inputs, f32 accumulation.
    h2 = jnp.dot(h1.astype(jnp.bfloat16), w2_ref[...],
                 preferred_element_type=jnp.float32)
    h2 = jnp.maximum(h2 + b2_ref[...], 0.0)

    # fc3 (out_features == 1): VPU multiply + lane reduce, MXU stays free.
    q = jnp.sum(h2 * w3_ref[...], axis=-1, keepdims=True) + b3_ref[...]
    o_ref[...] = q.astype(o_ref.dtype)


def _round_up(n, m):
    return ((n + m - 1) // m) * m


def _select_tiling(B, *, max_tile=2048):
    """Pick (tile, n_blocks, b_pad).

    - tile is always a multiple of 8 (block-shape rule).
    - n_blocks >= 2 whenever B >= 16 so v7x can run both TensorCores.
    - tile sized to minimize padding instead of padding B up to a fixed tile.
    """
    if B < 16:
        n_blocks = 1
    else:
        n_blocks = max(2, pl.cdiv(B, max_tile))
    tile = _round_up(pl.cdiv(B, n_blocks), 8)
    b_pad = n_blocks * tile
    return tile, n_blocks, b_pad


def prepare_params(params):
    """Convert PyTorch-layout f32 params into the kernel layout (do once).

    params: (w1, b1, w2, b2, w3, b3) with w stored (in_features, out_features).
    Returns (w1_bf16, b1_f32, w2_bf16, b2_f32, w3row_f32, b3_f32).
    """
    w1, b1, w2, b2, w3, b3 = params
    return (
        w1.astype(jnp.bfloat16),                       # (S+A, 256)
        b1.reshape(1, -1).astype(jnp.float32),         # (1, 256)
        w2.astype(jnp.bfloat16),                       # (256, 256)
        b2.reshape(1, -1).astype(jnp.float32),         # (1, 256)
        w3.reshape(1, -1).astype(jnp.float32),         # (1, 256), f32 for VPU
        b3.reshape(1, 1).astype(jnp.float32),          # (1, 1)
    )


def critic_forward(state, action, kparams, *, max_tile=2048):
    """Fused critic MLP. state: (B, S), action: (B, A). Returns (B, 1) f32."""
    w1, b1, w2, b2, w3r, b3 = kparams
    B = state.shape[0]
    K = state.shape[1] + action.shape[1]

    # One concat + bf16 cast in the wrapper; no K padding (keeps HBM bytes low,
    # block last dim == full array dim so the (8,128) rule is satisfied).
    x = jnp.concatenate([state, action], axis=1).astype(jnp.bfloat16)

    tile, n_blocks, b_pad = _select_tiling(B, max_tile=max_tile)
    if b_pad != B:
        x = jnp.pad(x, ((0, b_pad - B), (0, 0)))

    def resident(arr):
        # Same block every step -> weight stays VMEM-resident after one DMA.
        return pl.BlockSpec(arr.shape, lambda i: (0, 0))

    out = pl.pallas_call(
        critic_kernel,
        out_shape=jax.ShapeDtypeStruct((b_pad, 1), jnp.float32),
        grid=(n_blocks,),
        in_specs=[
            pl.BlockSpec((tile, K), lambda i: (i, 0)),   # (state|action) tile
            resident(w1), resident(b1),
            resident(w2), resident(b2),
            resident(w3r), resident(b3),
        ],
        out_specs=pl.BlockSpec((tile, 1), lambda i: (i, 0)),
        compiler_params=pltpu.CompilerParams(
            dimension_semantics=("parallel",),
            vmem_limit_bytes=32 * 1024 * 1024,
        ),
    )(x, w1, b1, w2, b2, w3r, b3)

    return out[:B]


def init_params(key, state_dim, action_dim, hidden=256):
    """Deterministic synthetic init (shapes match the Critic's nn.Linear layers)."""
    in_dim = state_dim + action_dim
    keys = jax.random.split(key, 6)

    def linear(kw, kb, fan_in, fan_out):
        bound = 1.0 / jnp.sqrt(fan_in)
        w = jax.random.uniform(kw, (fan_in, fan_out), jnp.float32, -bound, bound)
        b = jax.random.uniform(kb, (1, fan_out), jnp.float32, -bound, bound)
        return w, b

    w1, b1 = linear(keys[0], keys[1], in_dim, hidden)
    w2, b2 = linear(keys[2], keys[3], hidden, hidden)
    w3, b3 = linear(keys[4], keys[5], hidden, 1)
    return (w1, b1, w2, b2, w3, b3)


def critic_reference(state, action, params):
    """Pure-JAX f32 reference mirroring the PyTorch forward."""
    w1, b1, w2, b2, w3, b3 = params
    x = jnp.concatenate([state, action], axis=1)
    x = jnp.maximum(x @ w1 + b1, 0.0)
    x = jnp.maximum(x @ w2 + b2, 0.0)
    return x @ w3 + b3


if __name__ == "__main__":
    B, STATE_DIM, ACTION_DIM = 2, 8, 4

    key = jax.random.PRNGKey(0)
    k_state, k_action, k_params = jax.random.split(key, 3)

    state = jax.random.normal(k_state, (B, STATE_DIM), jnp.float32)
    action = jax.random.normal(k_action, (B, ACTION_DIM), jnp.float32)
    params = init_params(k_params, STATE_DIM, ACTION_DIM)

    kparams = prepare_params(params)              # one-time layout / bf16 prep
    q = critic_forward(state, action, kparams)
    q = jax.block_until_ready(q)

    q_ref = critic_reference(state, action, params)
    assert q.shape == (B, 1), q.shape
    # bf16 MXU inputs (f32 accumulation) => slightly looser tolerance than pure f32.
    assert jnp.allclose(q, q_ref, atol=2e-2, rtol=2e-2), (q, q_ref)

    # Exercise a larger, non-multiple-of-tile batch to cover the tiling path
    # (>=2 grid steps, minimal padding).
    B2 = 600
    k_s2, k_a2 = jax.random.split(jax.random.PRNGKey(1), 2)
    state2 = jax.random.normal(k_s2, (B2, STATE_DIM), jnp.float32)
    action2 = jax.random.normal(k_a2, (B2, ACTION_DIM), jnp.float32)
    q2 = jax.block_until_ready(critic_forward(state2, action2, kparams))
    q2_ref = critic_reference(state2, action2, params)
    assert q2.shape == (B2, 1), q2.shape
    assert jnp.allclose(q2, q2_ref, atol=2e-2, rtol=2e-2)

    print("KERNEL_OK")
</pallas_src>

<mosaic_0001>
module attributes {stable_mosaic.version = 11 : i64} {
  func.func @critic_kernel(%arg0: i32, %arg1: memref<8x12xbf16, #tpu.memory_space<vmem>>, %arg2: memref<12x256xbf16, #tpu.memory_space<vmem>>, %arg3: memref<1x256xf32, #tpu.memory_space<vmem>>, %arg4: memref<256x256xbf16, #tpu.memory_space<vmem>>, %arg5: memref<1x256xf32, #tpu.memory_space<vmem>>, %arg6: memref<1x256xf32, #tpu.memory_space<vmem>>, %arg7: memref<1x1xf32, #tpu.memory_space<vmem>>, %arg8: memref<8x1xf32, #tpu.memory_space<vmem>>) attributes {dimension_semantics = [#tpu.dimension_semantics<parallel>], iteration_bounds = array<i64: 1>, scalar_prefetch = 0 : i64, scratch_operands = 0 : i64, tpu.core_type = #tpu.core_type<tc>, window_params = [{transform_indices = @transform_0, window_bounds = array<i64: 8, 12>}, {pipeline_mode = #tpu.pipeline_mode<synchronous>, transform_indices = @transform_1, window_bounds = array<i64: 12, 256>}, {pipeline_mode = #tpu.pipeline_mode<synchronous>, transform_indices = @transform_2, window_bounds = array<i64: 1, 256>}, {pipeline_mode = #tpu.pipeline_mode<synchronous>, transform_indices = @transform_3, window_bounds = array<i64: 256, 256>}, {pipeline_mode = #tpu.pipeline_mode<synchronous>, transform_indices = @transform_4, window_bounds = array<i64: 1, 256>}, {pipeline_mode = #tpu.pipeline_mode<synchronous>, transform_indices = @transform_5, window_bounds = array<i64: 1, 256>}, {pipeline_mode = #tpu.pipeline_mode<synchronous>, transform_indices = @transform_6, window_bounds = array<i64: 1, 1>}, {transform_indices = @transform_7, window_bounds = array<i64: 8, 1>}]} {
    %c0 = arith.constant 0 : index
    %c0_0 = arith.constant 0 : index
    %0 = vector.load %arg1[%c0, %c0_0] : memref<8x12xbf16, #tpu.memory_space<vmem>>, vector<8x12xbf16>
    %c0_1 = arith.constant 0 : index
    %c0_2 = arith.constant 0 : index
    %1 = vector.load %arg2[%c0_1, %c0_2] : memref<12x256xbf16, #tpu.memory_space<vmem>>, vector<12x256xbf16>
    %cst = arith.constant dense<0.000000e+00> : vector<8x256xf32>
    %2 = tpu.matmul %0, %1, %cst {dimension_numbers = #tpu.dot_dimension_numbers<[1], [0], [0], [1], [0, 0, 1, 1], [], []>} : vector<8x12xbf16>, vector<12x256xbf16>, vector<8x256xf32> -> vector<8x256xf32>
    %c0_3 = arith.constant 0 : index
    %c0_4 = arith.constant 0 : index
    %3 = vector.load %arg3[%c0_3, %c0_4] : memref<1x256xf32, #tpu.memory_space<vmem>>, vector<1x256xf32>
    %4 = vector.broadcast %3 : vector<1x256xf32> to vector<8x256xf32>
    %5 = arith.addf %2, %4 : vector<8x256xf32>
    %cst_5 = arith.constant 0.000000e+00 : f32
    %6 = vector.broadcast %cst_5 : f32 to vector<8x256xf32>
    %7 = arith.maximumf %5, %6 : vector<8x256xf32>
    %8 = arith.truncf %7 : vector<8x256xf32> to vector<8x256xbf16>
    %c0_6 = arith.constant 0 : index
    %c0_7 = arith.constant 0 : index
    %9 = vector.load %arg4[%c0_6, %c0_7] : memref<256x256xbf16, #tpu.memory_space<vmem>>, vector<256x256xbf16>
    %cst_8 = arith.constant dense<0.000000e+00> : vector<8x256xf32>
    %10 = tpu.matmul %8, %9, %cst_8 {dimension_numbers = #tpu.dot_dimension_numbers<[1], [0], [0], [1], [0, 0, 1, 1], [], []>} : vector<8x256xbf16>, vector<256x256xbf16>, vector<8x256xf32> -> vector<8x256xf32>
    %c0_9 = arith.constant 0 : index
    %c0_10 = arith.constant 0 : index
    %11 = vector.load %arg5[%c0_9, %c0_10] : memref<1x256xf32, #tpu.memory_space<vmem>>, vector<1x256xf32>
    %12 = vector.broadcast %11 : vector<1x256xf32> to vector<8x256xf32>
    %13 = arith.addf %10, %12 : vector<8x256xf32>
    %cst_11 = arith.constant 0.000000e+00 : f32
    %14 = vector.broadcast %cst_11 : f32 to vector<8x256xf32>
    %15 = arith.maximumf %13, %14 : vector<8x256xf32>
    %c0_12 = arith.constant 0 : index
    %c0_13 = arith.constant 0 : index
    %16 = vector.load %arg6[%c0_12, %c0_13] : memref<1x256xf32, #tpu.memory_space<vmem>>, vector<1x256xf32>
    %17 = vector.broadcast %16 : vector<1x256xf32> to vector<8x256xf32>
    %18 = arith.mulf %15, %17 : vector<8x256xf32>
    %cst_14 = arith.constant dense<0.000000e+00> : vector<8xf32>
    %19 = vector.multi_reduction <add>, %18, %cst_14 [1] : vector<8x256xf32> to vector<8xf32>
    %20 = vector.shape_cast %19 : vector<8xf32> to vector<8x1xf32>
    %c0_15 = arith.constant 0 : index
    %c0_16 = arith.constant 0 : index
    %21 = vector.load %arg7[%c0_15, %c0_16] : memref<1x1xf32, #tpu.memory_space<vmem>>, vector<1x1xf32>
    %22 = vector.broadcast %21 : vector<1x1xf32> to vector<8x1xf32>
    %23 = arith.addf %20, %22 : vector<8x1xf32>
    %c0_17 = arith.constant 0 : index
    %c0_18 = arith.constant 0 : index
    %24 = vector.load %arg8[%c0_17, %c0_18] : memref<8x1xf32, #tpu.memory_space<vmem>>, vector<8x1xf32>
    tpu.vector_store %arg8[%c0_17, %c0_18], %23 {strides = array<i32>} : memref<8x1xf32, #tpu.memory_space<vmem>>, vector<8x1xf32>,
    return
  }
  func.func @transform_0(%arg0: i32) -> (i32, i32) {
    %c0_i32 = arith.constant 0 : i32
    %c0_i32_0 = arith.constant 0 : i32
    return %arg0, %c0_i32 : i32, i32
  }
  func.func @transform_1(%arg0: i32) -> (i32, i32) {
    %c0_i32 = arith.constant 0 : i32
    %c0_i32_0 = arith.constant 0 : i32
    %c0_i32_1 = arith.constant 0 : i32
    return %c0_i32, %c0_i32_0 : i32, i32
  }
  func.func @transform_2(%arg0: i32) -> (i32, i32) {
    %c0_i32 = arith.constant 0 : i32
    %c0_i32_0 = arith.constant 0 : i32
    %c0_i32_1 = arith.constant 0 : i32
    return %c0_i32, %c0_i32_0 : i32, i32
  }
  func.func @transform_3(%arg0: i32) -> (i32, i32) {
    %c0_i32 = arith.constant 0 : i32
    %c0_i32_0 = arith.constant 0 : i32
    %c0_i32_1 = arith.constant 0 : i32
    return %c0_i32, %c0_i32_0 : i32, i32
  }
  func.func @transform_4(%arg0: i32) -> (i32, i32) {
    %c0_i32 = arith.constant 0 : i32
    %c0_i32_0 = arith.constant 0 : i32
    %c0_i32_1 = arith.constant 0 : i32
    return %c0_i32, %c0_i32_0 : i32, i32
  }
  func.func @transform_5(%arg0: i32) -> (i32, i32) {
    %c0_i32 = arith.constant 0 : i32
    %c0_i32_0 = arith.constant 0 : i32
    %c0_i32_1 = arith.constant 0 : i32
    return %c0_i32, %c0_i32_0 : i32, i32
  }
  func.func @transform_6(%arg0: i32) -> (i32, i32) {
    %c0_i32 = arith.constant 0 : i32
    %c0_i32_0 = arith.constant 0 : i32
    %c0_i32_1 = arith.constant 0 : i32
    return %c0_i32, %c0_i32_0 : i32, i32
  }
  func.func @transform_7(%arg0: i32) -> (i32, i32) {
    %c0_i32 = arith.constant 0 : i32
    %c0_i32_0 = arith.constant 0 : i32
    return %arg0, %c0_i32 : i32, i32
  }
}

</mosaic_0001>

<llo_original>
// kernel: tpu_custom_call.1
$region0: #{tpu_custom_call.1}
  #allocation0 [shape = 'u32[]', space=smem, size = 0x4, offset = 0x4, fixed_abs, tag = 'smem constant byte address 0x4 - core index']
  #allocation1 [shape = 'u32[144,128]{1,0:T(1,128)}', space=vmem, size = 0x12000, scoped, tag = 'internal scratch']
  #allocation2 [shape = 'f32[1,1]{1,0:T(1,128)S(1)}', space=vmem, size = 0x200, scoped, tag = 'scoped memory for tpu_custom_call.1']
  %s0 = inlined_call_operand.hbm [shape: bf16[8,12], index: 0, kind: input, shape index: {}]
  %s1 = inlined_call_operand.hbm [shape: bf16[12,256], index: 1, kind: input, shape index: {}]
  %s2 = inlined_call_operand.vmem [shape: f32[1,256], index: 2, kind: input, shape index: {}]
  %s3 = inlined_call_operand.hbm [shape: bf16[256,256], index: 3, kind: input, shape index: {}]
  %s4 = inlined_call_operand.vmem [shape: f32[1,256], index: 4, kind: input, shape index: {}]
  %s5 = inlined_call_operand.vmem [shape: f32[1,256], index: 5, kind: input, shape index: {}]
  %s6 = inlined_call_operand.<no memory space> [shape: f32[1,1], index: 6, kind: input, shape index: {}]
  %s7 = inlined_call_operand.vmem [shape: f32[8,1], index: 7, kind: output, shape index: {}]
  %s8 = sld [smem:[#allocation0]]
  $region50: #{tpu_custom_call.1} parent=0
    _
  %s10 = ssub.s32 1, %s8
  %s11 = scalar_select 0, %s10, %s8
  %v12 = vstv %s6
  %13 = vst [vmem:[#allocation2] sm:$0x1] %v12
  $region1: #{tpu_custom_call.1} parent=0
    #allocation3 [shape = 'u8[2048]{0}', space=vmem, size = 0x800, scoped, tag = 'input window, operand 0, single buffered']
    #allocation4 [shape = 's32[1]{0}', space=sflag, size = 0x4, scoped, tag = 'scoped memory for tpu_custom_call.1']
    #allocation5 [shape = 'u8[8192]{0}', space=vmem, size = 0x2000, scoped, tag = 'input window, operand 1, single buffered']
    #allocation6 [shape = 's32[1]{0}', space=sflag, size = 0x4, scoped, tag = 'scoped memory for tpu_custom_call.1']
    #allocation7 [shape = 'u8[131072]{0}', space=vmem, size = 0x20000, scoped, tag = 'input window, operand 3, single buffered']
    %14 = vsyncpa [#allocation4], 0
    %15 = vsyncpa [#allocation6], 0
    // Predicated region
    $region2: #{tpu_custom_call.1} parent=1 // pred_check
      _
    $region3: #{tpu_custom_call.1} parent=1 // pred_check_branch
      %17 = sbr.rel (0) target = $region5
    $region4: #{tpu_custom_call.1} parent=1 // pred_region
      %s19 = ssub.s32 64, 64
      %20 = vsyncadd [#allocation4], %s19
      %s22 = sshll.u32 [#allocation3], 4
      %s23 = int_to_ptr.vmem [resolvable:$true] %s22
      %25 = dma.hbm_to_vmem [thread:$0]  %s0, 64, %s23, [#allocation4]
    $region5: #{tpu_custom_call.1} parent=1 // pred_fallthru
      _
    // Predicated region
    $region6: #{tpu_custom_call.1} parent=1 // pred_check
      _
    $region7: #{tpu_custom_call.1} parent=1 // pred_check_branch
      %27 = sbr.rel (0) target = $region9
    $region8: #{tpu_custom_call.1} parent=1 // pred_region
      %s29 = ssub.s32 256, 256
      %30 = vsyncadd [#allocation6], %s29
      %s31 = sshll.u32 [#allocation5], 4
      %s32 = int_to_ptr.vmem [resolvable:$true] %s31
      %37 = dma.hbm_to_vmem [thread:$0]  %s1, 256, %s32, [#allocation6], 128, 128, 8
    $region9: #{tpu_custom_call.1} parent=1 // pred_fallthru
      _
    // Predicated region
    $region10: #{tpu_custom_call.1} parent=1 // pred_check
      _
    $region11: #{tpu_custom_call.1} parent=1 // pred_check_branch
      %39 = sbr.rel (0) target = $region13
    $region12: #{tpu_custom_call.1} parent=1 // pred_region
      _
    $region13: #{tpu_custom_call.1} parent=1 // pred_fallthru
      _
    // Predicated region
    $region14: #{tpu_custom_call.1} parent=1 // pred_check
      _
    $region15: #{tpu_custom_call.1} parent=1 // pred_check_branch
      %41 = sbr.rel (0) target = $region17
    $region16: #{tpu_custom_call.1} parent=1 // pred_region
      %s43 = ssub.s32 4096, 4096
      %44 = vsyncadd [#allocation6], %s43
      %s45 = sshll.u32 [#allocation7], 4
      %s46 = int_to_ptr.vmem [resolvable:$true] %s45
      %51 = dma.hbm_to_vmem [thread:$0]  %s3, 4096, %s46, [#allocation6], 128, 128, 8
    $region17: #{tpu_custom_call.1} parent=1 // pred_fallthru
      _
    // Predicated region
    $region18: #{tpu_custom_call.1} parent=1 // pred_check
      _
    $region19: #{tpu_custom_call.1} parent=1 // pred_check_branch
      %53 = sbr.rel (0) target = $region21
    $region20: #{tpu_custom_call.1} parent=1 // pred_region
      _
    $region21: #{tpu_custom_call.1} parent=1 // pred_fallthru
      _
    // Predicated region
    $region22: #{tpu_custom_call.1} parent=1 // pred_check
      _
    $region23: #{tpu_custom_call.1} parent=1 // pred_check_branch
      %55 = sbr.rel (0) target = $region25
    $region24: #{tpu_custom_call.1} parent=1 // pred_region
      _
    $region25: #{tpu_custom_call.1} parent=1 // pred_fallthru
      _
    // Predicated region
    $region26: #{tpu_custom_call.1} parent=1 // pred_check
      _
    $region27: #{tpu_custom_call.1} parent=1 // pred_check_branch
      %57 = sbr.rel (0) target = $region29
    $region28: #{tpu_custom_call.1} parent=1 // pred_region
      _
    $region29: #{tpu_custom_call.1} parent=1 // pred_fallthru
      _
    // Predicated region
    $region30: #{tpu_custom_call.1} parent=1 // pred_check
      _
    $region31: #{tpu_custom_call.1} parent=1 // pred_check_branch
      %59 = sbr.rel (0) target = $region33
    $region32: #{tpu_custom_call.1} parent=1 // pred_region
      %60 = dma.done [#allocation4], 64
    $region33: #{tpu_custom_call.1} parent=1 // pred_fallthru
      _
    // Predicated region
    $region34: #{tpu_custom_call.1} parent=1 // pred_check
      _
    $region35: #{tpu_custom_call.1} parent=1 // pred_check_branch
      %62 = sbr.rel (0) target = $region37
    $region36: #{tpu_custom_call.1} parent=1 // pred_region
      %63 = dma.done [#allocation6], 256
    $region37: #{tpu_custom_call.1} parent=1 // pred_fallthru
      _
    // Predicated region
    $region38: #{tpu_custom_call.1} parent=1 // pred_check
      _
    $region39: #{tpu_custom_call.1} parent=1 // pred_check_branch
      %65 = sbr.rel (0) target = $region41
    $region40: #{tpu_custom_call.1} parent=1 // pred_region
      %66 = dma.done [#allocation6], 4096
    $region41: #{tpu_custom_call.1} parent=1 // pred_fallthru
      _
    %v68 = vld [vmem:[#allocation3] sm:$0xf]
    %v69 = vld [vmem:[#allocation5] sm:$0xff]
    %v70 = vld [vmem:[#allocation5 + $0x8] sm:$0x33]
    %v71 = vld [vmem:[%s2] sm:$0x3]
    %v73 = vlaneseq
    %v74 = vshrl.u32 %v73, 7
    %v75 = vsub.s32 0, %v74
    %v76 = vrot.slane %v71, %v75
    %v77 = vlaneseq
    %v78 = vshrl.u32 %v77, 7
    %v79 = vsub.s32 1, %v78
    %v80 = vrot.slane %v71, %v79
    %v85 = vunpack.c.l.b16 %v69
    %v86 = vunpack.c.h.b16 %v69
    %v87 = vunpack.c.l.b16 %v70
    %v88 = vunpack.c.h.b16 %v70
    %v89 = vpack.c.b16 %v87, %v85
    %v90 = vpack.c.b16 %v88, %v86
    %vm91 = vcmask 97280
    %v93 = vsel %vm91, %v68, 0
    %vm95 = vcmask 1045504
    %v97 = vsel %vm95, %v89, 0
    %v100 = vsel %vm95, %v90, 0
    %102 = vmatprep.subr.bf16.mxu0 %v100
    %103 = vmatpush1.bf16.msra.mxu0 %v97
    %104 = vmatprep.subr.bf16.mxu0 0
    %105 = vmatpush1.bf16.msra.mxu0 0
    %106 = vmatprep.subr.bf16.mxu0 0
    %107 = vmatpush1.bf16.msra.mxu0 0
    %108 = vmatprep.subr.bf16.mxu0 0
    %109 = vmatpush1.bf16.msra.mxu0 0
    %110 = vmatprep.subr.bf16.mxu0 0
    %111 = vmatpush1.bf16.msra.mxu0 0
    %112 = vmatprep.subr.bf16.mxu0 0
    %113 = vmatpush1.bf16.msra.mxu0 0
    %114 = vmatprep.subr.bf16.mxu0 0
    %115 = vmatpush1.bf16.msra.mxu0 0
    %116 = vmatprep.subr.bf16.mxu0 0
    %117 = vmatpush1.bf16.msra.mxu0 0
    %118 = vmatprep.subr.bf16.mxu0 0
    %119 = vmatpush1.bf16.msra.mxu0 0
    %120 = vmatprep.subr.bf16.mxu0 0
    %121 = vmatpush1.bf16.msra.mxu0 0
    %122 = vmatprep.subr.bf16.mxu0 0
    %123 = vmatpush1.bf16.msra.mxu0 0
    %124 = vmatprep.subr.bf16.mxu0 0
    %125 = vmatpush1.bf16.msra.mxu0 0
    %126 = vmatprep.subr.bf16.mxu0 0
    %127 = vmatpush1.bf16.msra.mxu0 0
    %128 = vmatprep.subr.bf16.mxu0 0
    %129 = vmatpush1.bf16.msra.mxu0 0
    %130 = vmatprep.subr.bf16.mxu0 0
    %131 = vmatpush1.bf16.msra.mxu0 0
    %132 = vmatprep.subr.bf16.mxu0 0
    %133 = vmatpush1.bf16.msra.mxu0 0
    %134 = vmatprep.mubr.bf16.mxu0 0
    %135 = vmatmul.mubr.bf16.gmra.mrb[0].mxu0 %v93
    %v136 = vpop.f32.mrb[0].mxu0
    %v137 = vadd.f32 %v76, %v136
    %v138 = vpop.f32.mrb[0].mxu0
    %v139 = vadd.f32 %v80, %v138
    %v140 = vpop.f32.mrb[0].mxu0
    %v141 = vpop.f32.mrb[0].mxu0
    %142 = vdwg.mxu0
    %v143 = vmax.f32 %v137, 0.0
    %v144 = vmax.f32 %v139, 0.0
    %v145 = vpack.c.bf16 %v143, %v143
    %v146 = vpack.c.bf16 %v144, %v144
    %v147 = vld [vmem:[#allocation7] sm:$0xff]
    %v148 = vld [vmem:[#allocation7 + $0x8] sm:$0xff]
    %v149 = vld [vmem:[#allocation7 + $0x10] sm:$0xff]
    %v150 = vld [vmem:[#allocation7 + $0x18] sm:$0xff]
    %v151 = vld [vmem:[#allocation7 + $0x20] sm:$0xff]
    %v152 = vld [vmem:[#allocation7 + $0x28] sm:$0xff]
    %v153 = vld [vmem:[#allocation7 + $0x30] sm:$0xff]
    %v154 = vld [vmem:[#allocation7 + $0x38] sm:$0xff]
    %v155 = vld [vmem:[#allocation7 + $0x40] sm:$0xff]
    %v156 = vld [vmem:[#allocation7 + $0x48] sm:$0xff]
    %v157 = vld [vmem:[#allocation7 + $0x50] sm:$0xff]
    %v158 = vld [vmem:[#allocation7 + $0x58] sm:$0xff]
    %v159 = vld [vmem:[#allocation7 + $0x60] sm:$0xff]
    %v160 = vld [vmem:[#allocation7 + $0x68] sm:$0xff]
    %v161 = vld [vmem:[#allocation7 + $0x70] sm:$0xff]
    %v162 = vld [vmem:[#allocation7 + $0x78] sm:$0xff]
    %v163 = vld [vmem:[#allocation7 + $0x80] sm:$0xff]
    %v164 = vld [vmem:[#allocation7 + $0x88] sm:$0xff]
    %v165 = vld [vmem:[#allocation7 + $0x90] sm:$0xff]
    %v166 = vld [vmem:[#allocation7 + $0x98] sm:$0xff]
    %v167 = vld [vmem:[#allocation7 + $0xa0] sm:$0xff]
    %v168 = vld [vmem:[#allocation7 + $0xa8] sm:$0xff]
    %v169 = vld [vmem:[#allocation7 + $0xb0] sm:$0xff]
    %v170 = vld [vmem:[#allocation7 + $0xb8] sm:$0xff]
    %v171 = vld [vmem:[#allocation7 + $0xc0] sm:$0xff]
    %v172 = vld [vmem:[#allocation7 + $0xc8] sm:$0xff]
    %v173 = vld [vmem:[#allocation7 + $0xd0] sm:$0xff]
    %v174 = vld [vmem:[#allocation7 + $0xd8] sm:$0xff]
    %v175 = vld [vmem:[#allocation7 + $0xe0] sm:$0xff]
    %v176 = vld [vmem:[#allocation7 + $0xe8] sm:$0xff]
    %v177 = vld [vmem:[#allocation7 + $0xf0] sm:$0xff]
    %v178 = vld [vmem:[#allocation7 + $0xf8] sm:$0xff]
    %v179 = vld [vmem:[%s4] sm:$0x3]
    %v181 = vlaneseq
    %v182 = vshrl.u32 %v181, 7
    %v183 = vsub.s32 0, %v182
    %v184 = vrot.slane %v179, %v183
    %v185 = vlaneseq
    %v186 = vshrl.u32 %v185, 7
    %v187 = vsub.s32 1, %v186
    %v188 = vrot.slane %v179, %v187
    %v223 = vunpack.c.l.b16 %v147
    %v224 = vunpack.c.h.b16 %v147
    %v225 = vunpack.c.l.b16 %v148
    %v226 = vunpack.c.h.b16 %v148
    %v227 = vunpack.c.l.b16 %v149
    %v228 = vunpack.c.h.b16 %v149
    %v229 = vunpack.c.l.b16 %v150
    %v230 = vunpack.c.h.b16 %v150
    %v231 = vunpack.c.l.b16 %v151
    %v232 = vunpack.c.h.b16 %v151
    %v233 = vunpack.c.l.b16 %v152
    %v234 = vunpack.c.h.b16 %v152
    %v235 = vunpack.c.l.b16 %v153
    %v236 = vunpack.c.h.b16 %v153
    %v237 = vunpack.c.l.b16 %v154
    %v238 = vunpack.c.h.b16 %v154
    %v239 = vunpack.c.l.b16 %v155
    %v240 = vunpack.c.h.b16 %v155
    %v241 = vunpack.c.l.b16 %v156
    %v242 = vunpack.c.h.b16 %v156
    %v243 = vunpack.c.l.b16 %v157
    %v244 = vunpack.c.h.b16 %v157
    %v245 = vunpack.c.l.b16 %v158
    %v246 = vunpack.c.h.b16 %v158
    %v247 = vunpack.c.l.b16 %v159
    %v248 = vunpack.c.h.b16 %v159
    %v249 = vunpack.c.l.b16 %v160
    %v250 = vunpack.c.h.b16 %v160
    %v251 = vunpack.c.l.b16 %v161
    %v252 = vunpack.c.h.b16 %v161
    %v253 = vunpack.c.l.b16 %v162
    %v254 = vunpack.c.h.b16 %v162
    %v255 = vunpack.c.l.b16 %v163
    %v256 = vunpack.c.h.b16 %v163
    %v257 = vunpack.c.l.b16 %v164
    %v258 = vunpack.c.h.b16 %v164
    %v259 = vunpack.c.l.b16 %v165
    %v260 = vunpack.c.h.b16 %v165
    %v261 = vunpack.c.l.b16 %v166
    %v262 = vunpack.c.h.b16 %v166
    %v263 = vunpack.c.l.b16 %v167
    %v264 = vunpack.c.h.b16 %v167
    %v265 = vunpack.c.l.b16 %v168
    %v266 = vunpack.c.h.b16 %v168
    %v267 = vunpack.c.l.b16 %v169
    %v268 = vunpack.c.h.b16 %v169
    %v269 = vunpack.c.l.b16 %v170
    %v270 = vunpack.c.h.b16 %v170
    %v271 = vunpack.c.l.b16 %v171
    %v272 = vunpack.c.h.b16 %v171
    %v273 = vunpack.c.l.b16 %v172
    %v274 = vunpack.c.h.b16 %v172
    %v275 = vunpack.c.l.b16 %v173
    %v276 = vunpack.c.h.b16 %v173
    %v277 = vunpack.c.l.b16 %v174
    %v278 = vunpack.c.h.b16 %v174
    %v279 = vunpack.c.l.b16 %v175
    %v280 = vunpack.c.h.b16 %v175
    %v281 = vunpack.c.l.b16 %v176
    %v282 = vunpack.c.h.b16 %v176
    %v283 = vunpack.c.l.b16 %v177
    %v284 = vunpack.c.h.b16 %v177
    %v285 = vunpack.c.l.b16 %v178
    %v286 = vunpack.c.h.b16 %v178
    %v287 = vpack.c.b16 %v225, %v223
    %v288 = vpack.c.b16 %v226, %v224
    %v289 = vpack.c.b16 %v229, %v227
    %v290 = vpack.c.b16 %v230, %v228
    %v291 = vpack.c.b16 %v233, %v231
    %v292 = vpack.c.b16 %v234, %v232
    %v293 = vpack.c.b16 %v237, %v235
    %v294 = vpack.c.b16 %v238, %v236
    %v295 = vpack.c.b16 %v241, %v239
    %v296 = vpack.c.b16 %v242, %v240
    %v297 = vpack.c.b16 %v245, %v243
    %v298 = vpack.c.b16 %v246, %v244
    %v299 = vpack.c.b16 %v249, %v247
    %v300 = vpack.c.b16 %v250, %v248
    %v301 = vpack.c.b16 %v253, %v251
    %v302 = vpack.c.b16 %v254, %v252
    %v303 = vpack.c.b16 %v257, %v255
    %v304 = vpack.c.b16 %v258, %v256
    %v305 = vpack.c.b16 %v261, %v259
    %v306 = vpack.c.b16 %v262, %v260
    %v307 = vpack.c.b16 %v265, %v263
    %v308 = vpack.c.b16 %v266, %v264
    %v309 = vpack.c.b16 %v269, %v267
    %v310 = vpack.c.b16 %v270, %v268
    %v311 = vpack.c.b16 %v273, %v271
    %v312 = vpack.c.b16 %v274, %v272
    %v313 = vpack.c.b16 %v277, %v275
    %v314 = vpack.c.b16 %v278, %v276
    %v315 = vpack.c.b16 %v281, %v279
    %v316 = vpack.c.b16 %v282, %v280
    %v317 = vpack.c.b16 %v285, %v283
    %v318 = vpack.c.b16 %v286, %v284
    %351 = vmatprep.subr.bf16.mxu0 %v288
    %352 = vmatpush1.bf16.msra.mxu0 %v287
    %353 = vmatprep.subr.bf16.mxu0 %v290
    %354 = vmatpush1.bf16.msra.mxu0 %v289
    %355 = vmatprep.subr.bf16.mxu0 %v292
    %356 = vmatpush1.bf16.msra.mxu0 %v291
    %357 = vmatprep.subr.bf16.mxu0 %v294
    %358 = vmatpush1.bf16.msra.mxu0 %v293
    %359 = vmatprep.subr.bf16.mxu0 %v296
    %360 = vmatpush1.bf16.msra.mxu0 %v295
    %361 = vmatprep.subr.bf16.mxu0 %v298
    %362 = vmatpush1.bf16.msra.mxu0 %v297
    %363 = vmatprep.subr.bf16.mxu0 %v300
    %364 = vmatpush1.bf16.msra.mxu0 %v299
    %365 = vmatprep.subr.bf16.mxu0 %v302
    %366 = vmatpush1.bf16.msra.mxu0 %v301
    %367 = vmatprep.subr.bf16.mxu0 %v304
    %368 = vmatpush1.bf16.msra.mxu0 %v303
    %369 = vmatprep.subr.bf16.mxu0 %v306
    %370 = vmatpush1.bf16.msra.mxu0 %v305
    %371 = vmatprep.subr.bf16.mxu0 %v308
    %372 = vmatpush1.bf16.msra.mxu0 %v307
    %373 = vmatprep.subr.bf16.mxu0 %v310
    %374 = vmatpush1.bf16.msra.mxu0 %v309
    %375 = vmatprep.subr.bf16.mxu0 %v312
    %376 = vmatpush1.bf16.msra.mxu0 %v311
    %377 = vmatprep.subr.bf16.mxu0 %v314
    %378 = vmatpush1.bf16.msra.mxu0 %v313
    %379 = vmatprep.subr.bf16.mxu0 %v316
    %380 = vmatpush1.bf16.msra.mxu0 %v315
    %381 = vmatprep.subr.bf16.mxu0 %v318
    %382 = vmatpush1.bf16.msra.mxu0 %v317
    %383 = vmatprep.mubr.bf16.mxu0 %v146
    %384 = vmatmul.mubr.bf16.gmra.mrb[0].mxu0 %v145
    %v385 = vpop.f32.mrb[0].mxu0
    %v386 = vadd.f32 %v184, %v385
    %v387 = vpop.f32.mrb[0].mxu0
    %v388 = vadd.f32 %v188, %v387
    %v389 = vpop.f32.mrb[0].mxu0
    %v390 = vpop.f32.mrb[0].mxu0
    %391 = vdwg.mxu0
    %v392 = vmax.f32 %v386, 0.0
    %v393 = vmax.f32 %v388, 0.0
    %v394 = vld [vmem:[%s5] sm:$0x3]
    %v396 = vlaneseq
    %v397 = vshrl.u32 %v396, 7
    %v398 = vsub.s32 0, %v397
    %v399 = vrot.slane %v394, %v398
    %v400 = vlaneseq
    %v401 = vshrl.u32 %v400, 7
    %v402 = vsub.s32 1, %v401
    %v403 = vrot.slane %v394, %v402
    %v406 = vmul.f32 %v392, %v399
    %v407 = vmul.f32 %v393, %v403
    %v408 = vadd.f32 %v406, %v407
    %409 = vadd.xlane.f32.xlu0 %v408
    %v410 = vpop.xlane.xlu0 %409
    %v411 = vld [vmem:[#allocation2] sm:$0x1]
    %v413 = vlaneseq
    %v414 = vshrl.u32 %v413, 7
    %v415 = vsub.s32 0, %v414
    %v416 = vrot.slane %v411, %v415
    %v418 = vadd.f32 %v410, %v416
    %vm419 = vcmask 7168
    %420 = vst.msk [vmem:[%s7] sm:$0xff] %vm419, %v418
    // Predicated region
    $region42: #{tpu_custom_call.1} parent=1 // pred_check
      _
    $region43: #{tpu_custom_call.1} parent=1 // pred_check_branch
      %422 = sbr.rel (0) target = $region45
    $region44: #{tpu_custom_call.1} parent=1 // pred_region
      _
    $region45: #{tpu_custom_call.1} parent=1 // pred_fallthru
      _
    // Predicated region
    $region46: #{tpu_custom_call.1} parent=1 // pred_check
      _
    $region47: #{tpu_custom_call.1} parent=1 // pred_check_branch
      %424 = sbr.rel (0) target = $region49
    $region48: #{tpu_custom_call.1} parent=1 // pred_region
      _
    $region49: #{tpu_custom_call.1} parent=1 // pred_fallthru
      _
    %425 = vsyncpa [#allocation4], 1
    %426 = vsyncpa [#allocation6], 1

</llo_original>
